<compile_context>
chip_gen: v5e
topology: v5e:2x2
jax: 0.10.0
libtpu: 0.0.40
codegen_flags: <defaults>
</compile_context>

<pallas_src>
import math
import functools

import jax
import jax.numpy as jnp
from jax import lax
from jax.experimental import pallas as pl
from jax.experimental.pallas import tpu as pltpu

NUM_FREQS = 4          # -> PE dim = 3 * 2 * NUM_FREQS = 24
SCALE = 1.0
RATIO = 0.25


def _gelu(v):
    # matches torch.nn.GELU(approximate='tanh')
    return jax.nn.gelu(v, approximate=True)


def _round_up(v, mult):
    return ((v + mult - 1) // mult) * mult


def _vmem_limit_bytes(frac=0.75, fallback_cap=64 * 1024 * 1024):
    # per-generation scoped-VMEM limit: ~96 MiB on v5e/v6e (128 MiB), ~48 MiB on v7x (64 MiB)
    try:
        cap = pltpu.get_tpu_info().vmem_capacity_bytes
    except Exception:
        cap = fallback_cap
    return int(cap * frac)


# ---------------------------------------------------------------------------
# Farthest point sampling: pos lives in VMEM as SoA (3, N_pad), the sequential
# argmax / min-distance loop runs on-chip with a lane-dense (1, N_pad) distance
# scratch, indices go to SMEM.
# ---------------------------------------------------------------------------
def _fps_kernel(pos_ref, idx_ref, dist_ref, *, m, n_valid):
    n_pad = pos_ref.shape[1]
    col = lax.broadcasted_iota(jnp.int32, (1, n_pad), 1)
    valid = col < n_valid

    pos = pos_ref[...]                                           # (3, N_pad) f32
    idx_ref[0] = jnp.int32(0)                                    # deterministic start at point 0
    d0 = jnp.sum((pos - pos[:, 0:1]) ** 2, axis=0, keepdims=True)
    dist_ref[...] = jnp.where(valid, d0, -1.0)                   # padded cols can never win argmax

    @pl.loop(1, m)
    def _(step):
        d = dist_ref[...]                                        # (1, N_pad)
        dmax = jnp.max(d)
        nxt = jnp.min(jnp.where(d >= dmax, col, n_pad))          # first-argmax (scalar)
        idx_ref[step] = nxt.astype(jnp.int32)
        p = pos_ref[...]
        # TODO(synk): a dynamic lane-slice read pos_ref[:, pl.ds(nxt, 1)] would avoid this
        #             masked O(N) select; kept as a dense masked sum for safe lowering.
        pn = jnp.sum(jnp.where(col == nxt, p, 0.0), axis=1, keepdims=True)   # (3, 1)
        dn = jnp.sum((p - pn) ** 2, axis=0, keepdims=True)                   # (1, N_pad)
        dist_ref[...] = jnp.minimum(d, dn)                       # padded cols stay at -1


def fps_pallas(pos, m):
    n = pos.shape[0]
    n_pad = _round_up(n, 128)
    pos_t = jnp.pad(pos.T.astype(jnp.float32), ((0, 0), (0, n_pad - n)))    # (3, N_pad) SoA
    return pl.pallas_call(
        functools.partial(_fps_kernel, m=m, n_valid=n),
        out_shape=jax.ShapeDtypeStruct((m,), jnp.int32),
        in_specs=[pl.BlockSpec(memory_space=pltpu.MemorySpace.VMEM)],
        out_specs=pl.BlockSpec(memory_space=pltpu.MemorySpace.SMEM),
        scratch_shapes=[pltpu.VMEM((1, n_pad), jnp.float32)],
    )(pos_t)


# ---------------------------------------------------------------------------
# Fused SA kernel (feature-major / points-on-lanes): nearest-assignment +
# packed-PE message MLP + mean aggregation + global MLP.  The grid iterates
# over 128-multiple tiles of the N source points (reduction axis); the
# (M, H2+1) sums+counts accumulator lives in VMEM scratch and is finalized
# (mean + global MLP) on the last step.
# ---------------------------------------------------------------------------
def _sa_kernel(src_ref, qmat_ref, qt_ref, w1_ref, b1_ref, w2_ref, b2_ref,
               wg1_ref, bg1_ref, wg2_ref, bg2_ref, out_ref, acc_ref,
               *, num_freqs, scale, c_in, n_valid):
    i = pl.program_id(0)
    f32, bf16 = jnp.float32, jnp.bfloat16

    @pl.when(i == 0)
    def _():
        acc_ref[...] = jnp.zeros_like(acc_ref)

    src = src_ref[...]                                  # (4+C, tn) f32 = [pos; 1; x], points on lanes
    tn = src.shape[1]
    m = qmat_ref.shape[0]
    nh = acc_ref.shape[1] - 1                           # H2

    # --- nearest(pos, pos[idx]): d2'[m, p] = -2 q_m . p_p + |q_m|^2  (p^2 constant -> dropped)
    d2 = jnp.dot(qmat_ref[...], src[0:4, :], preferred_element_type=f32)          # (M, tn)
    iota_m = lax.broadcasted_iota(jnp.int32, (m, tn), 0).astype(f32)
    dmin = jnp.min(d2, axis=0, keepdims=True)                                     # (1, tn)
    row = jnp.min(jnp.where(d2 <= dmin, iota_m, float(m)), axis=0, keepdims=True)  # first-argmin

    lane = lax.broadcasted_iota(jnp.int32, (1, tn), 1)
    valid = (i * tn + lane) < n_valid                                             # (1, tn)
    onehot = jnp.where((iota_m == row) & valid, 1.0, 0.0)                         # (M, tn) f32

    # --- message: pe((pos_j - pos_i) * scale) ++ x_j, local MLP — all feature-major ------
    pos_j = src[0:3, :]
    pos_i = jnp.dot(qt_ref[...], onehot, preferred_element_type=f32)              # (3, tn)
    rel = (pos_j - pos_i) * scale

    # packed PE: one sin + one cos over all frequencies at once (lane-dense (3K, tn) slab)
    ang = jnp.concatenate([rel * (2.0 ** kk) for kk in range(num_freqs)], axis=0)  # (3K, tn)
    feat = jnp.concatenate([src[4:4 + c_in, :], jnp.sin(ang), jnp.cos(ang)],
                           axis=0).astype(bf16)                                   # (C+6K, tn)

    h1 = _gelu(jnp.dot(w1_ref[...], feat, preferred_element_type=f32) + b1_ref[...])   # (H1, tn)
    h2 = _gelu(jnp.dot(w2_ref[...], h1.astype(bf16), preferred_element_type=f32)
               + b2_ref[...])                                                     # (H2, tn)

    # --- mean aggregation: one matmul yields both per-center sums AND counts -------------
    h2c = jnp.concatenate([h2, jnp.ones((1, tn), f32)], axis=0).astype(bf16)       # (H2+1, tn)
    acc_ref[...] += lax.dot_general(onehot.astype(bf16), h2c,
                                    (((1,), (1,)), ((), ())),
                                    preferred_element_type=f32)                   # (M, H2+1)

    @pl.when(i == pl.num_programs(0) - 1)
    def _():
        acc = acc_ref[...]
        mean = acc[:, :nh] / jnp.maximum(acc[:, nh:], 1.0)                        # (M, H2)
        g = _gelu(jnp.dot(mean.astype(bf16), wg1_ref[...], preferred_element_type=f32)
                  + bg1_ref[...])
        g2 = _gelu(jnp.dot(g.astype(bf16), wg2_ref[...], preferred_element_type=f32)
                   + bg2_ref[...])
        out_ref[...] = g2.astype(out_ref.dtype)                                   # plain_last=False


def sa_conv_pallas(pos, x, pos_dst, params, *, num_freqs=NUM_FREQS, scale=SCALE,
                   max_tile_n=512, temp_budget_bytes=6 * 1024 * 1024):
    n, c = x.shape
    m = pos_dst.shape[0]
    h2 = params["w2"].shape[1]
    g_out = params["wg2"].shape[1]
    f32, bf16 = jnp.float32, jnp.bfloat16

    # points live on the lane axis -> tile_n must be a multiple of 128; bound it so the
    # per-step (M, tile_n) temporaries (d2 f32 + iota + onehot f32/bf16 ~ 18 B/elt) fit.
    cap = max(128, (temp_budget_bytes // max(18 * m, 1)) // 128 * 128)
    tile_n = max(128, min(max_tile_n, cap, _round_up(n, 128)))
    n_pad = _round_up(n, tile_n)

    # --- host-side packing (grid-invariant) ------------------------------------------
    # feature-major source stream: rows = [pos (3); ones (1); x (C)], points on lanes
    src_t = jnp.concatenate([pos.T.astype(f32), jnp.ones((1, n), f32), x.T.astype(f32)], axis=0)
    src_t = jnp.pad(src_t, ((0, 0), (0, n_pad - n)))

    q = pos_dst.astype(f32)                                                   # (M, 3)
    qmat = jnp.concatenate([-2.0 * q, jnp.sum(q * q, axis=1, keepdims=True)], axis=1)   # (M, 4)
    q_t = q.T                                                                 # (3, M)

    # local MLP layer 1, transposed: columns ordered [x (C), sin k-major (3K), cos (3K)]
    sin_rows = jnp.concatenate([params["w1p"][2 * j] for j in range(num_freqs)], axis=0)
    cos_rows = jnp.concatenate([params["w1p"][2 * j + 1] for j in range(num_freqs)], axis=0)
    w1_t = jnp.concatenate([params["w1x"], sin_rows, cos_rows], axis=0).T.astype(bf16)  # (H1, C+6K)
    b1_c = params["b1"].reshape(-1, 1).astype(f32)                            # (H1, 1)
    w2_t = params["w2"].T.astype(bf16)                                        # (H2, H1)
    b2_c = params["b2"].reshape(-1, 1).astype(f32)                            # (H2, 1)
    wg1 = params["wg1"].astype(bf16)                                          # (H2, G1)
    bg1 = params["bg1"].astype(f32)                                           # (1, G1)
    wg2 = params["wg2"].astype(bf16)                                          # (G1, G2)
    bg2 = params["bg2"].astype(f32)                                           # (1, G2)

    kernel = functools.partial(_sa_kernel, num_freqs=num_freqs, scale=scale,
                               c_in=c, n_valid=n)

    # grid-invariant operands: fully VMEM-resident (single copy, not double-buffered)
    vmem_res = pl.BlockSpec(memory_space=pltpu.MemorySpace.VMEM)

    return pl.pallas_call(
        kernel,
        out_shape=jax.ShapeDtypeStruct((m, g_out), jnp.float32),
        grid_spec=pltpu.PrefetchScalarGridSpec(
            num_scalar_prefetch=0,
            grid=(n_pad // tile_n,),
            in_specs=[pl.BlockSpec((4 + c, tile_n), lambda i: (0, i))]        # [pos;1;x] tiled over N
                     + [vmem_res] * 10,
            out_specs=pl.BlockSpec((m, g_out), lambda i: (0, 0)),
            scratch_shapes=[pltpu.VMEM((m, h2 + 1), jnp.float32)],            # sums + counts
        ),
        compiler_params=pltpu.CompilerParams(
            dimension_semantics=("arbitrary",),
            vmem_limit_bytes=_vmem_limit_bytes()),
    )(src_t, qmat, q_t, w1_t, b1_c, w2_t, b2_c, wg1, bg1, wg2, bg2)


def sa_module_forward(x, pos, batch, params, *, ratio=RATIO, num_freqs=NUM_FREQS,
                      scale=SCALE, max_tile_n=512):
    n = pos.shape[0]
    m = int(math.ceil(ratio * n))
    idx = fps_pallas(pos, m)
    pos_dst = pos[idx]
    x_out = sa_conv_pallas(pos, x, pos_dst, params,
                           num_freqs=num_freqs, scale=scale, max_tile_n=max_tile_n)
    return [x_out, pos_dst, batch[idx]]


# ---------------------------------------------------------------------------
# Deterministic parameter init (MLP([C+24, 32, 32]) local, MLP([32, 64, 32]) global)
# ---------------------------------------------------------------------------
def init_params(key, c_in, nn_dims, global_nn_dims, num_freqs=NUM_FREQS):
    h1, h2 = nn_dims[1], nn_dims[2]
    g1, g2 = global_nn_dims[1], global_nn_dims[2]
    ks = jax.random.split(key, 10)
    pe_dim = 3 * 2 * num_freqs

    def lin(kk, fan_in, shape):
        return (jax.random.normal(kk, shape, jnp.float32) / jnp.sqrt(fan_in)).astype(jnp.float32)

    fan1 = c_in + pe_dim
    return dict(
        w1x=lin(ks[0], fan1, (c_in, h1)),
        w1p=lin(ks[1], fan1, (2 * num_freqs, 3, h1)),
        b1=lin(ks[2], fan1, (1, h1)),
        w2=lin(ks[3], h1, (h1, h2)),
        b2=lin(ks[4], h1, (1, h2)),
        wg1=lin(ks[5], h2, (h2, g1)),
        bg1=lin(ks[6], h2, (1, g1)),
        wg2=lin(ks[7], g1, (g1, g2)),
        bg2=lin(ks[8], g1, (1, g2)),
    )


# ---------------------------------------------------------------------------
# Pure-JAX f32 reference (same math) for a sanity check.
# ---------------------------------------------------------------------------
def fps_single_batch(pos, m):
    def body(i, carry):
        sel, dists = carry
        nxt = jnp.argmax(dists).astype(jnp.int32)
        sel = sel.at[i].set(nxt)
        d = jnp.sum((pos - pos[nxt]) ** 2, axis=1)
        return sel, jnp.minimum(dists, d)

    sel0 = jnp.zeros((m,), jnp.int32)
    d0 = jnp.sum((pos - pos[0]) ** 2, axis=1)
    sel, _ = lax.fori_loop(1, m, body, (sel0, d0))
    return sel


def reference_forward(x, pos, batch, params, *, ratio=RATIO,
                      num_freqs=NUM_FREQS, scale=SCALE):
    n = pos.shape[0]
    m = int(math.ceil(ratio * n))
    idx = fps_single_batch(pos, m)
    q = pos[idx]
    d2 = jnp.sum((pos[:, None, :] - q[None, :, :]) ** 2, axis=-1)
    row = jnp.argmin(d2, axis=1)
    rel = (pos - q[row]) * scale
    h1 = x @ params["w1x"] + params["b1"]
    for k in range(num_freqs):
        ang = rel * (2.0 ** k)
        h1 = h1 + jnp.sin(ang) @ params["w1p"][2 * k] + jnp.cos(ang) @ params["w1p"][2 * k + 1]
    h1 = _gelu(h1)
    h2 = _gelu(h1 @ params["w2"] + params["b2"])
    seg_sum = jax.ops.segment_sum(h2, row, num_segments=m)
    cnt = jax.ops.segment_sum(jnp.ones((n,), jnp.float32), row, num_segments=m)
    mean = seg_sum / jnp.maximum(cnt, 1.0)[:, None]
    g = _gelu(mean @ params["wg1"] + params["bg1"])
    g = _gelu(g @ params["wg2"] + params["bg2"])
    return [g, q, batch[idx]]


if __name__ == "__main__":
    N, C = 64, 4
    nn_dims = [C, 32, 32]          # local MLP input becomes C + 24 = 28 after PE concat
    global_nn_dims = [32, 64, 32]

    key = jax.random.PRNGKey(0)
    kx, kp, kw = jax.random.split(key, 3)
    x = jax.random.normal(kx, (N, C), jnp.float32)
    pos = jax.random.normal(kp, (N, 3), jnp.float32)
    batch = jnp.zeros((N,), jnp.int32)
    params = init_params(kw, C, nn_dims, global_nn_dims)

    x_out, pos_out, batch_out = sa_module_forward(x, pos, batch, params)
    jax.block_until_ready(x_out)

    x_ref, pos_ref, batch_ref = reference_forward(x, pos, batch, params)
    assert x_out.shape == (16, 32) and pos_out.shape == (16, 3) and batch_out.shape == (16,)
    # kernel uses bf16 matmul operands with f32 accumulation -> slightly looser tolerance
    assert jnp.allclose(x_out, x_ref, rtol=2e-2, atol=2e-2), \
        float(jnp.max(jnp.abs(x_out - x_ref)))
    assert jnp.allclose(pos_out, pos_ref)
    assert jnp.array_equal(batch_out, batch_ref)

    print("KERNEL_OK")
</pallas_src>

<mosaic_0001>
module attributes {stable_mosaic.version = 11 : i64} {
  func.func @_fps_kernel(%arg0: memref<3x128xf32, #tpu.memory_space<vmem>>, %arg1: memref<16xi32, #tpu.memory_space<smem>>, %arg2: memref<1x128xf32, #tpu.memory_space<vmem>>) attributes {dimension_semantics = [], scalar_prefetch = 0 : i64, scratch_operands = 1 : i64, tpu.core_type = #tpu.core_type<tc>} {
    %0 = tpu.iota {dimensions = array<i32: 1>} : vector<1x128xi32>
    %c64_i32 = arith.constant 64 : i32
    %1 = vector.broadcast %c64_i32 : i32 to vector<1x128xi32>
    %2 = arith.cmpi slt, %0, %1 : vector<1x128xi32>
    %c0 = arith.constant 0 : index
    %c0_0 = arith.constant 0 : index
    %3 = vector.load %arg0[%c0, %c0_0] : memref<3x128xf32, #tpu.memory_space<vmem>>, vector<3x128xf32>
    %c0_i32 = arith.constant 0 : i32
    %c0_1 = arith.constant 0 : index
    %4 = memref.load %arg1[%c0_1] : memref<16xi32, #tpu.memory_space<smem>>
    memref.store %c0_i32, %arg1[%c0_1] : memref<16xi32, #tpu.memory_space<smem>>
    %5 = vector.extract_strided_slice %3 {offsets = [0, 0], sizes = [3, 1], strides = [1, 1]} : vector<3x128xf32> to vector<3x1xf32>
    %6 = vector.broadcast %5 : vector<3x1xf32> to vector<3x128xf32>
    %7 = arith.subf %3, %6 : vector<3x128xf32>
    %8 = arith.mulf %7, %7 : vector<3x128xf32>
    %cst = arith.constant dense<0.000000e+00> : vector<128xf32>
    %9 = vector.multi_reduction <add>, %8, %cst [0] : vector<3x128xf32> to vector<128xf32>
    %10 = vector.shape_cast %9 : vector<128xf32> to vector<1x128xf32>
    %cst_2 = arith.constant -1.000000e+00 : f32
    %11 = vector.broadcast %cst_2 : f32 to vector<1x128xf32>
    %12 = arith.select %2, %10, %11 : vector<1x128xi1>, vector<1x128xf32>
    %c0_3 = arith.constant 0 : index
    %c0_4 = arith.constant 0 : index
    %13 = vector.load %arg2[%c0_3, %c0_4] : memref<1x128xf32, #tpu.memory_space<vmem>>, vector<1x128xf32>
    tpu.vector_store %arg2[%c0_3, %c0_4], %12 {strides = array<i32>} : memref<1x128xf32, #tpu.memory_space<vmem>>, vector<1x128xf32>,
    %c0_i32_5 = arith.constant 0 : i32
    %c15_i32 = arith.constant 15 : i32
    %14 = arith.addi %c0_i32_5, %c15_i32 : i32
    %c1_i32 = arith.constant 1 : i32
    scf.for %arg3 = %c0_i32_5 to %14 step %c1_i32  : i32 {
      %c1_i32_7 = arith.constant 1 : i32
      %15 = arith.muli %arg3, %c1_i32_7 : i32
      %c1_i32_8 = arith.constant 1 : i32
      %16 = arith.addi %c1_i32_8, %15 : i32
      %c0_9 = arith.constant 0 : index
      %c0_10 = arith.constant 0 : index
      %17 = vector.load %arg2[%c0_9, %c0_10] : memref<1x128xf32, #tpu.memory_space<vmem>>, vector<1x128xf32>
      %18 = vector.shape_cast %17 : vector<1x128xf32> to vector<1x1x128xf32>
      %cst_11 = arith.constant dense<0xFF800000> : vector<1xf32>
      %19 = vector.multi_reduction <maximumf>, %18, %cst_11 [1, 2] : vector<1x1x128xf32> to vector<1xf32>
      %20 = vector.shape_cast %19 : vector<1xf32> to vector<1x1x1xf32>
      %21 = vector.extract %20[0, 0, 0] : f32 from vector<1x1x1xf32>
      %22 = vector.broadcast %21 : f32 to vector<1x128xf32>
      %23 = arith.cmpf oge, %17, %22 : vector<1x128xf32>
      %c128_i32 = arith.constant 128 : i32
      %24 = vector.broadcast %c128_i32 : i32 to vector<1x128xi32>
      %25 = arith.select %23, %0, %24 : vector<1x128xi1>, vector<1x128xi32>
      %26 = vector.shape_cast %25 : vector<1x128xi32> to vector<1x1x128xi32>
      %cst_12 = arith.constant dense<2147483647> : vector<1xi32>
      %27 = vector.multi_reduction <minsi>, %26, %cst_12 [1, 2] : vector<1x1x128xi32> to vector<1xi32>
      %28 = vector.shape_cast %27 : vector<1xi32> to vector<1x1x1xi32>
      %29 = vector.extract %28[0, 0, 0] : i32 from vector<1x1x1xi32>
      %30 = arith.index_cast %16 : i32 to index
      %31 = memref.load %arg1[%30] : memref<16xi32, #tpu.memory_space<smem>>
      memref.store %29, %arg1[%30] : memref<16xi32, #tpu.memory_space<smem>>
      %c0_13 = arith.constant 0 : index
      %c0_14 = arith.constant 0 : index
      %32 = vector.load %arg0[%c0_13, %c0_14] : memref<3x128xf32, #tpu.memory_space<vmem>>, vector<3x128xf32>
      %33 = vector.broadcast %29 : i32 to vector<1x128xi32>
      %34 = arith.cmpi eq, %0, %33 : vector<1x128xi32>
      %cst_15 = arith.constant 0.000000e+00 : f32
      %35 = vector.shape_cast %34 : vector<1x128xi1> to vector<1x128xi1>
      %36 = vector.broadcast %35 : vector<1x128xi1> to vector<3x128xi1>
      %37 = vector.broadcast %cst_15 : f32 to vector<3x128xf32>
      %38 = arith.select %36, %32, %37 : vector<3x128xi1>, vector<3x128xf32>
      %cst_16 = arith.constant dense<0.000000e+00> : vector<3xf32>
      %39 = vector.multi_reduction <add>, %38, %cst_16 [1] : vector<3x128xf32> to vector<3xf32>
      %40 = vector.shape_cast %39 : vector<3xf32> to vector<3x1xf32>
      %41 = vector.broadcast %40 : vector<3x1xf32> to vector<3x128xf32>
      %42 = arith.subf %32, %41 : vector<3x128xf32>
      %43 = arith.mulf %42, %42 : vector<3x128xf32>
      %cst_17 = arith.constant dense<0.000000e+00> : vector<128xf32>
      %44 = vector.multi_reduction <add>, %43, %cst_17 [0] : vector<3x128xf32> to vector<128xf32>
      %45 = vector.shape_cast %44 : vector<128xf32> to vector<1x128xf32>
      %46 = arith.minimumf %17, %45 : vector<1x128xf32>
      %c0_18 = arith.constant 0 : index
      %c0_19 = arith.constant 0 : index
      %47 = vector.load %arg2[%c0_18, %c0_19] : memref<1x128xf32, #tpu.memory_space<vmem>>, vector<1x128xf32>
      tpu.vector_store %arg2[%c0_18, %c0_19], %46 {strides = array<i32>} : memref<1x128xf32, #tpu.memory_space<vmem>>, vector<1x128xf32>,
    }
    %c15_i32_6 = arith.constant 15 : i32
    return
  }
}

</mosaic_0001>

<llo_original>
// kernel: tpu_custom_call.1
$region0: #{tpu_custom_call.1}
  #allocation0 [shape = 'u32[]', space=smem, size = 0x4, offset = 0x4, fixed_abs, tag = 'smem constant byte address 0x4 - core index']
  #allocation1 [shape = 'u32[72,128]{1,0:T(1,128)}', space=vmem, size = 0x9000, scoped, tag = 'internal scratch']
  #allocation2 [shape = 'f32[1,128]{1,0:T(1,128)}', space=vmem, size = 0x200, scoped, tag = 'scratch operand']
  %s0 = inlined_call_operand.hbm [shape: f32[3,128], index: 0, kind: input, shape index: {}]
  %s1 = inlined_call_operand.hbm [shape: s32[16], index: 1, kind: output, shape index: {}]
  %s2 = sld [smem:[#allocation0]]
  $region25: #{tpu_custom_call.1} parent=0
    _
  %s4 = ssub.s32 1, %s2
  %s5 = scalar_select 0, %s4, %s2
  $region1: #{tpu_custom_call.1} parent=0
    #allocation3 [shape = 'u8[2048]{0}', space=vmem, size = 0x800, scoped, tag = 'input window, operand 0, single buffered']
    #allocation4 [shape = 's32[1]{0}', space=sflag, size = 0x4, scoped, tag = 'scoped memory for tpu_custom_call.1']
    #allocation5 [shape = 's32[1]{0}', space=sflag, size = 0x4, scoped, tag = 'scoped memory for tpu_custom_call.1']
    #allocation6 [shape = 'u8[512]{0}', space=smem, size = 0x200, scoped, tag = 'output window, operand 0, single buffered']
    %6 = vsyncpa [#allocation4], 0
    %7 = vsyncpa [#allocation5], 0
    // Predicated region
    $region2: #{tpu_custom_call.1} parent=1 // pred_check
      _
    $region3: #{tpu_custom_call.1} parent=1 // pred_check_branch
      %9 = sbr.rel (0) target = $region5
    $region4: #{tpu_custom_call.1} parent=1 // pred_region
      %11 = vsyncadd [#allocation4], 0
      %s13 = sshll.u32 %s0, 4
      %s14 = int_to_ptr.hbm [resolvable:$true] %s13
      %s15 = sshll.u32 [#allocation3], 4
      %s16 = int_to_ptr.vmem [resolvable:$true] %s15
      %18 = dma.hbm_to_vmem [thread:$0]  %s14, 64, %s16, [#allocation4]
    $region5: #{tpu_custom_call.1} parent=1 // pred_fallthru
      _
    // Predicated region
    $region6: #{tpu_custom_call.1} parent=1 // pred_check
      _
    $region7: #{tpu_custom_call.1} parent=1 // pred_check_branch
      %20 = sbr.rel (0) target = $region9
    $region8: #{tpu_custom_call.1} parent=1 // pred_region
      %22 = dma.done [#allocation4], 64
    $region9: #{tpu_custom_call.1} parent=1 // pred_fallthru
      _
    %v23 = vlaneseq
    %v24 = vand.u32 %v23, 127
    %vm25 = vcmp.lt.s32.totalorder %v24, 64
    %v26 = vld [vmem:[#allocation3] sm:$0x7]
    %s27 = scalar_lea.smem [#allocation6], 0
    %28 = sst [smem:[%s27]] 0
    %30 = vset.pattern.permute.xlu0 0
    %31 = vperm.xlu0 %30, %v26
    %v32 = vpop.permute.xlu0 %31
    %v34 = vsub.f32 %v26, %v32
    %v35 = vmul.f32 %v34, %v34
    %vm36 = vcmask 1042432
    %v37 = vsel %vm36, %v35, 0.0
    %v38 = vrot.slane %v37, 4
    %v39 = vadd.f32 %v37, %v38
    %v40 = vrot.slane %v39, 2
    %v41 = vadd.f32 %v39, %v40
    %v42 = vrot.slane %v41, 1
    %v43 = vadd.f32 %v41, %v42
    %v44 = vsel %vm25, %v43, -1.0
    %45 = vst [vmem:[#allocation2] sm:$0x1] %v44
    loop: start=0, step=1, limit=15
    $region10: #{tpu_custom_call.1} parent=1 // loop_pre_header
      _
    $region11: #{tpu_custom_call.1} parent=1 // loop_header
      %s47 = sphi 0, %s51
      %p48 = scmp.ge.s32.totalorder %s47, 15
    $region12: #{tpu_custom_call.1} parent=1 // loop_header_branch
      %50 = sbr.rel (%p48) target = $region16
    $region13: #{tpu_custom_call.1} parent=1 // loop_body
      %s52 = sadd.s32 %s47, 1
      %v53 = vld [vmem:[#allocation2] sm:$0x1]
      %vm54 = vcmask 1040384
      %v55 = vsel %vm54, %v53, -inf
      %56 = vmax.xlane.f32.xlu0 %v55
      %v57 = vpop.xlane.xlu0 %56
      %v58 = vrot.slane %v57, 4
      %v59 = vmax.f32 %v57, %v58
      %v60 = vrot.slane %v59, 2
      %v61 = vmax.f32 %v59, %v60
      %v62 = vrot.slane %v61, 1
      %v63 = vmax.f32 %v61, %v62
      %s64 = vtos %v63
      %v65 = vstv %s64
      %vm66 = vcmp.ge.f32.partialorder %v53, %v65
      %v67 = vsel %vm66, %v24, 128
      %v68 = vsel %vm54, %v67, 2147483647
      %v69 = vand.u32 %v68, 65535
      %v70 = vshra.s32 %v68, 16
      %v71 = vcvt.s32.f32 %v69
      %v72 = vcvt.s32.f32 %v70
      %73 = vmin.xlane.f32.xlu0 %v72
      %v74 = vpop.xlane.xlu0 %73
      %vm75 = vcmp.eq.f32.partialorder %v72, %v74
      %v76 = vsel %vm75, %v71, inf
      %77 = vmin.xlane.f32.xlu0 %v76
      %v78 = vpop.xlane.xlu0 %77
      %v79 = vcvt.f32.s32 %v78
      %v80 = vcvt.f32.s32 %v74
      %v81 = vshll.u32 %v80, 16
      %v82 = vadd.s32 %v81, %v79
      %v83 = vrot.slane %v82, 4
      %vm84 = vcmp.lt.s32.totalorder %v82, %v83
      %v85 = vsel %vm84, %v82, %v83
      %v86 = vrot.slane %v85, 2
      %vm87 = vcmp.lt.s32.totalorder %v85, %v86
      %v88 = vsel %vm87, %v85, %v86
      %v89 = vrot.slane %v88, 1
      %vm90 = vcmp.lt.s32.totalorder %v88, %v89
      %v91 = vsel %vm90, %v88, %v89
      %s92 = vtos %v91
      %s93 = scalar_lea.smem [#allocation6], %s52
      %94 = sst [smem:[%s93]] %s92
      %v95 = vld [vmem:[#allocation3] sm:$0x7]
      %v96 = vstv %s92
      %vm97 = vcmp.eq.s32.totalorder %v24, %v96
      %v98 = vsel %vm97, 1, 0
      %vm99 = vcmp.eq.s32.totalorder %v98, 1
      %v100 = vsel %vm99, %v95, 0.0
      %v101 = vsel %vm36, %v100, 0.0
      %102 = vadd.xlane.f32.xlu0 %v101
      %v103 = vpop.xlane.xlu0 %102
      %v104 = vsub.f32 %v95, %v103
      %v105 = vmul.f32 %v104, %v104
      %v106 = vsel %vm36, %v105, 0.0
      %v107 = vrot.slane %v106, 4
      %v108 = vadd.f32 %v106, %v107
      %v109 = vrot.slane %v108, 2
      %v110 = vadd.f32 %v108, %v109
      %v111 = vrot.slane %v110, 1
      %v112 = vadd.f32 %v110, %v111
      %v113 = vmin.f32 %v53, %v112
      %114 = vst [vmem:[#allocation2] sm:$0x1] %v113
    $region14: #{tpu_custom_call.1} parent=1 // loop_footer
      %s51 = sadd.s32 1, %s47
    $region15: #{tpu_custom_call.1} parent=1 // loop_footer_branch
      %46 = sbr.rel target = $region11
    $region16: #{tpu_custom_call.1} parent=1 // loop_exit
      _
    // Predicated region
    $region17: #{tpu_custom_call.1} parent=1 // pred_check
      _
    $region18: #{tpu_custom_call.1} parent=1 // pred_check_branch
      %116 = sbr.rel (0) target = $region20
    $region19: #{tpu_custom_call.1} parent=1 // pred_region
      %118 = vsyncadd [#allocation5], 0
      %s120 = sshll.u32 %s1, 4
      %s121 = int_to_ptr.hbm [resolvable:$true] %s120
      %123 = dma.smem_to_hbm [#allocation6], 16, %s121, [#allocation5]
    $region20: #{tpu_custom_call.1} parent=1 // pred_fallthru
      _
    // Predicated region
    $region21: #{tpu_custom_call.1} parent=1 // pred_check
      _
    $region22: #{tpu_custom_call.1} parent=1 // pred_check_branch
      %125 = sbr.rel (0) target = $region24
    $region23: #{tpu_custom_call.1} parent=1 // pred_region
      %127 = dma.done [#allocation5], 16
    $region24: #{tpu_custom_call.1} parent=1 // pred_fallthru
      _
    %128 = sfence
    %129 = vsyncpa [#allocation4], 1
    %130 = vsyncpa [#allocation5], 1

</llo_original>
